<compile_context>
chip_gen: v7x
topology: tpu7x:2x2x1
jax: 0.10.0
libtpu: 0.0.40
codegen_flags: <defaults>
</compile_context>

<pallas_src>
import functools

import jax
import jax.numpy as jnp
from jax.experimental import pallas as pl
from jax.experimental.pallas import tpu as pltpu

EPS = 1e-6    # matches nn.BatchNorm1d(in_dim, affine=False, eps=1e-06)
LANE = 128
SUBLANE = 8


def linear_classifier_kernel(x_ref, w_ref, b_ref, o_ref, acc_ref, *, inv_l):
    # x_ref  : (B, L_tile, D)  VMEM  -- one streamed sequence tile
    # w_ref  : (D, O_pad)      VMEM  -- resident (constant index map)
    # b_ref  : (1, O_pad)      VMEM  -- resident
    # o_ref  : (B, O_pad)      VMEM  -- output-resident across the reduction axis
    # acc_ref: (B, D) f32      VMEM scratch -- running sum over the sequence axis
    l = pl.program_id(0)

    @pl.when(l == 0)
    def _init():
        acc_ref[...] = jnp.zeros_like(acc_ref)

    # Per-tile sequence sum (f32 accumulation); 1/L scale applied once at the end.
    acc_ref[...] += jnp.sum(x_ref[...], axis=1, dtype=jnp.float32)

    @pl.when(l == pl.num_programs(0) - 1)
    def _finalize():
        pooled = acc_ref[...] * inv_l                                 # (B, D) == x.mean(dim=1)
        # BatchNorm1d (training mode, affine=False): full-batch mean, biased variance.
        mu = jnp.mean(pooled, axis=0, keepdims=True)                  # (1, D)
        var = jnp.mean((pooled - mu) ** 2, axis=0, keepdims=True)     # (1, D)
        xn = (pooled - mu) * jax.lax.rsqrt(var + EPS)                 # rsqrt -> EUP slot
        # Linear: lane-dense (O padded to 128) -> unmasked stores; MXU matmul.
        out = jnp.dot(xn, w_ref[...], preferred_element_type=jnp.float32)
        o_ref[...] = out + b_ref[...]


def _pick_l_tile(B, L, D, itemsize, budget_bytes):
    """Largest sequence tile that is layout-legal and fits the VMEM budget.

    Legal second-last block dims are multiples of 8 or the full extent L.
    The x tile is double-buffered, hence the factor 2 in the budget check.
    """
    if L <= SUBLANE:
        return L
    max_rows = max(SUBLANE, budget_bytes // max(1, 2 * B * D * itemsize))
    best = None
    for cand in range(SUBLANE, L + 1, SUBLANE):
        if L % cand == 0 and cand <= max_rows:
            best = cand
    if best is None:
        best = L  # full-extent block is always layout-legal
    return best


def linear_classifier_forward(x, w, b, *, l_tile=None, vmem_limit_bytes=32 << 20):
    """x: (B, L, D), w: (O, D) f32 (PyTorch layout), b: (O,) f32 -> (B, O) f32."""
    B, L, D = x.shape
    O = w.shape[0]
    itemsize = jnp.dtype(x.dtype).itemsize
    if l_tile is None:
        # Leave most of the VMEM budget for W/b/output/accumulator + headroom.
        l_tile = _pick_l_tile(B, L, D, itemsize, budget_bytes=vmem_limit_bytes // 2)
    assert L % l_tile == 0, "sequence tile must divide L"

    # Lane-dense glue (wrapper-side layout plumbing, no extra compute):
    # weight transposed to (D, O) and O padded to a multiple of 128 with zeros,
    # bias padded likewise; the real logits are sliced back out after the call.
    # The batch axis is never padded: BN statistics are over the full batch.
    o_pad = ((O + LANE - 1) // LANE) * LANE
    w_t = jnp.zeros((D, o_pad), jnp.float32).at[:, :O].set(w.T)
    b_p = jnp.zeros((1, o_pad), jnp.float32).at[:, :O].set(b)

    kernel = functools.partial(linear_classifier_kernel, inv_l=1.0 / L)

    out_pad = pl.pallas_call(
        kernel,
        out_shape=jax.ShapeDtypeStruct((B, o_pad), jnp.float32),
        grid_spec=pltpu.PrefetchScalarGridSpec(
            num_scalar_prefetch=0,
            grid=(L // l_tile,),
            in_specs=[
                pl.BlockSpec((B, l_tile, D), lambda l: (0, l, 0)),  # x: stream L tiles
                pl.BlockSpec((D, o_pad), lambda l: (0, 0)),         # W: VMEM-resident
                pl.BlockSpec((1, o_pad), lambda l: (0, 0)),         # b: VMEM-resident
            ],
            out_specs=pl.BlockSpec((B, o_pad), lambda l: (0, 0)),   # output-resident
            scratch_shapes=[pltpu.VMEM((B, D), jnp.float32)],       # pooled-sum accumulator
        ),
        compiler_params=pltpu.CompilerParams(
            dimension_semantics=("arbitrary",),    # L is a reduction axis
            vmem_limit_bytes=vmem_limit_bytes,     # explicit; safe on v7x's 64 MiB VMEM
        ),
        cost_estimate=pl.CostEstimate(
            flops=B * L * D + 2 * B * D * o_pad + 6 * B * D,
            transcendentals=D,                     # rsqrt per feature
            bytes_accessed=(B * L * D) * itemsize + (D * o_pad + o_pad + B * o_pad) * 4,
        ),
    )(x, w_t, b_p)
    return out_pad[:, :O]


def init_params(key, in_dim, out_dim):
    # PyTorch nn.Linear default init: U(-1/sqrt(in_dim), 1/sqrt(in_dim))
    kw, kb = jax.random.split(key)
    bound = 1.0 / jnp.sqrt(jnp.float32(in_dim))
    w = jax.random.uniform(kw, (out_dim, in_dim), jnp.float32, -bound, bound)
    b = jax.random.uniform(kb, (out_dim,), jnp.float32, -bound, bound)
    return w, b


if __name__ == "__main__":
    B, L, D, O = 8, 32, 32, 16     # batch, seq, in_dim, out_dim (small demo shapes)

    key = jax.random.PRNGKey(0)
    kx, kp = jax.random.split(key)
    x = jax.random.normal(kx, (B, L, D), jnp.float32)
    w, b = init_params(kp, D, O)

    out = linear_classifier_forward(x, w, b)
    jax.block_until_ready(out)

    # sanity check against a pure-JAX reference of the same math
    pooled = x.mean(axis=1)
    mu = pooled.mean(axis=0, keepdims=True)
    var = ((pooled - mu) ** 2).mean(axis=0, keepdims=True)
    ref = (pooled - mu) / jnp.sqrt(var + EPS) @ w.T + b
    assert jnp.allclose(out, ref, atol=1e-4, rtol=1e-4), "mismatch vs reference"

    print("KERNEL_OK")
</pallas_src>

<mosaic_0001>
module attributes {stable_mosaic.version = 11 : i64} {
  func.func @linear_classifier_kernel(%arg0: i32, %arg1: memref<8x32x32xf32, #tpu.memory_space<vmem>>, %arg2: memref<32x128xf32, #tpu.memory_space<vmem>>, %arg3: memref<1x128xf32, #tpu.memory_space<vmem>>, %arg4: memref<8x128xf32, #tpu.memory_space<vmem>>, %arg5: memref<8x32xf32, #tpu.memory_space<vmem>>) attributes {dimension_semantics = [#tpu.dimension_semantics<arbitrary>], iteration_bounds = array<i64: 1>, scalar_prefetch = 0 : i64, scratch_operands = 1 : i64, tpu.core_type = #tpu.core_type<tc>, window_params = [{transform_indices = @transform_0, window_bounds = array<i64: 8, 32, 32>}, {pipeline_mode = #tpu.pipeline_mode<synchronous>, transform_indices = @transform_1, window_bounds = array<i64: 32, 128>}, {pipeline_mode = #tpu.pipeline_mode<synchronous>, transform_indices = @transform_2, window_bounds = array<i64: 1, 128>}, {pipeline_mode = #tpu.pipeline_mode<synchronous>, transform_indices = @transform_3, window_bounds = array<i64: 8, 128>}]} {
    %c0_i32 = arith.constant 0 : i32
    %0 = arith.cmpi eq, %arg0, %c0_i32 : i32
    %1 = arith.extui %0 : i1 to i32
    %c0_i32_0 = arith.constant 0 : i32
    %2 = arith.cmpi ne, %1, %c0_i32_0 : i32
    scf.if %2 {
      %cst_9 = arith.constant 0.000000e+00 : f32
      %11 = vector.broadcast %cst_9 : f32 to vector<8x32xf32>
      %c0_10 = arith.constant 0 : index
      %c0_11 = arith.constant 0 : index
      %12 = vector.load %arg5[%c0_10, %c0_11] : memref<8x32xf32, #tpu.memory_space<vmem>>, vector<8x32xf32>
      tpu.vector_store %arg5[%c0_10, %c0_11], %11 {strides = array<i32>} : memref<8x32xf32, #tpu.memory_space<vmem>>, vector<8x32xf32>,
    } else {
    }
    %c0 = arith.constant 0 : index
    %c0_1 = arith.constant 0 : index
    %3 = vector.load %arg5[%c0, %c0_1] : memref<8x32xf32, #tpu.memory_space<vmem>>, vector<8x32xf32>
    %c0_2 = arith.constant 0 : index
    %c0_3 = arith.constant 0 : index
    %c0_4 = arith.constant 0 : index
    %4 = vector.load %arg1[%c0_2, %c0_3, %c0_4] : memref<8x32x32xf32, #tpu.memory_space<vmem>>, vector<8x32x32xf32>
    %cst = arith.constant dense<0.000000e+00> : vector<8x32xf32>
    %5 = vector.multi_reduction <add>, %4, %cst [1] : vector<8x32x32xf32> to vector<8x32xf32>
    %6 = arith.addf %3, %5 : vector<8x32xf32>
    %c0_5 = arith.constant 0 : index
    %c0_6 = arith.constant 0 : index
    %7 = vector.load %arg5[%c0_5, %c0_6] : memref<8x32xf32, #tpu.memory_space<vmem>>, vector<8x32xf32>
    tpu.vector_store %arg5[%c0_5, %c0_6], %6 {strides = array<i32>} : memref<8x32xf32, #tpu.memory_space<vmem>>, vector<8x32xf32>,
    %c0_i32_7 = arith.constant 0 : i32
    %8 = arith.cmpi eq, %arg0, %c0_i32_7 : i32
    %9 = arith.extui %8 : i1 to i32
    %c0_i32_8 = arith.constant 0 : i32
    %10 = arith.cmpi ne, %9, %c0_i32_8 : i32
    scf.if %10 {
      %c0_9 = arith.constant 0 : index
      %c0_10 = arith.constant 0 : index
      %11 = vector.load %arg5[%c0_9, %c0_10] : memref<8x32xf32, #tpu.memory_space<vmem>>, vector<8x32xf32>
      %cst_11 = arith.constant 3.125000e-02 : f32
      %12 = vector.broadcast %cst_11 : f32 to vector<8x32xf32>
      %13 = arith.mulf %11, %12 : vector<8x32xf32>
      %cst_12 = arith.constant dense<0.000000e+00> : vector<32xf32>
      %14 = vector.multi_reduction <add>, %13, %cst_12 [0] : vector<8x32xf32> to vector<32xf32>
      %15 = vector.shape_cast %14 : vector<32xf32> to vector<1x32xf32>
      %cst_13 = arith.constant 8.000000e+00 : f32
      %16 = vector.broadcast %cst_13 : f32 to vector<1x32xf32>
      %17 = arith.divf %15, %16 : vector<1x32xf32>
      %18 = vector.broadcast %17 : vector<1x32xf32> to vector<8x32xf32>
      %19 = arith.subf %13, %18 : vector<8x32xf32>
      %20 = arith.mulf %19, %19 : vector<8x32xf32>
      %cst_14 = arith.constant dense<0.000000e+00> : vector<32xf32>
      %21 = vector.multi_reduction <add>, %20, %cst_14 [0] : vector<8x32xf32> to vector<32xf32>
      %22 = vector.shape_cast %21 : vector<32xf32> to vector<1x32xf32>
      %cst_15 = arith.constant 8.000000e+00 : f32
      %23 = vector.broadcast %cst_15 : f32 to vector<1x32xf32>
      %24 = arith.divf %22, %23 : vector<1x32xf32>
      %25 = vector.broadcast %17 : vector<1x32xf32> to vector<8x32xf32>
      %26 = arith.subf %13, %25 : vector<8x32xf32>
      %cst_16 = arith.constant 9.99999997E-7 : f32
      %27 = vector.broadcast %cst_16 : f32 to vector<1x32xf32>
      %28 = arith.addf %24, %27 : vector<1x32xf32>
      %29 = math.rsqrt %28 : vector<1x32xf32>
      %30 = vector.broadcast %29 : vector<1x32xf32> to vector<8x32xf32>
      %31 = arith.mulf %26, %30 : vector<8x32xf32>
      %c0_17 = arith.constant 0 : index
      %c0_18 = arith.constant 0 : index
      %32 = vector.load %arg2[%c0_17, %c0_18] : memref<32x128xf32, #tpu.memory_space<vmem>>, vector<32x128xf32>
      %cst_19 = arith.constant dense<0.000000e+00> : vector<8x128xf32>
      %33 = tpu.matmul %31, %32, %cst_19 {dimension_numbers = #tpu.dot_dimension_numbers<[1], [0], [0], [1], [0, 0, 1, 1], [], []>} : vector<8x32xf32>, vector<32x128xf32>, vector<8x128xf32> -> vector<8x128xf32>
      %c0_20 = arith.constant 0 : index
      %c0_21 = arith.constant 0 : index
      %34 = vector.load %arg3[%c0_20, %c0_21] : memref<1x128xf32, #tpu.memory_space<vmem>>, vector<1x128xf32>
      %35 = vector.broadcast %34 : vector<1x128xf32> to vector<8x128xf32>
      %36 = arith.addf %33, %35 : vector<8x128xf32>
      %c0_22 = arith.constant 0 : index
      %c0_23 = arith.constant 0 : index
      %37 = vector.load %arg4[%c0_22, %c0_23] : memref<8x128xf32, #tpu.memory_space<vmem>>, vector<8x128xf32>
      tpu.vector_store %arg4[%c0_22, %c0_23], %36 {strides = array<i32>} : memref<8x128xf32, #tpu.memory_space<vmem>>, vector<8x128xf32>,
    } else {
    }
    return
  }
  func.func @transform_0(%arg0: i32) -> (i32, i32, i32) {
    %c0_i32 = arith.constant 0 : i32
    %c0_i32_0 = arith.constant 0 : i32
    %c0_i32_1 = arith.constant 0 : i32
    return %c0_i32, %arg0, %c0_i32_0 : i32, i32, i32
  }
  func.func @transform_1(%arg0: i32) -> (i32, i32) {
    %c0_i32 = arith.constant 0 : i32
    %c0_i32_0 = arith.constant 0 : i32
    %c0_i32_1 = arith.constant 0 : i32
    return %c0_i32, %c0_i32_0 : i32, i32
  }
  func.func @transform_2(%arg0: i32) -> (i32, i32) {
    %c0_i32 = arith.constant 0 : i32
    %c0_i32_0 = arith.constant 0 : i32
    %c0_i32_1 = arith.constant 0 : i32
    return %c0_i32, %c0_i32_0 : i32, i32
  }
  func.func @transform_3(%arg0: i32) -> (i32, i32) {
    %c0_i32 = arith.constant 0 : i32
    %c0_i32_0 = arith.constant 0 : i32
    %c0_i32_1 = arith.constant 0 : i32
    return %c0_i32, %c0_i32_0 : i32, i32
  }
}

</mosaic_0001>

<llo_original>
// kernel: tpu_custom_call.1
$region0: #{tpu_custom_call.1}
  #allocation0 [shape = 'u32[]', space=smem, size = 0x4, offset = 0x4, fixed_abs, tag = 'smem constant byte address 0x4 - core index']
  #allocation1 [shape = 'u32[144,128]{1,0:T(1,128)}', space=vmem, size = 0x12000, scoped, tag = 'internal scratch']
  #allocation2 [shape = 'f32[8,32]{1,0:T(8,128)}', space=vmem, size = 0x1000, scoped, tag = 'scratch operand']
  %s0 = inlined_call_operand.hbm [shape: f32[8,32,32], index: 0, kind: input, shape index: {}]
  %s1 = inlined_call_operand.hbm [shape: f32[32,128], index: 1, kind: input, shape index: {}]
  %s2 = inlined_call_operand.vmem [shape: f32[1,128], index: 2, kind: input, shape index: {}]
  %s3 = inlined_call_operand.hbm [shape: f32[8,128], index: 3, kind: output, shape index: {}]
  %s4 = sld [smem:[#allocation0]]
  $region38: #{tpu_custom_call.1} parent=0
    _
  %s6 = ssub.s32 1, %s4
  %s7 = scalar_select 0, %s6, %s4
  $region1: #{tpu_custom_call.1} parent=0
    #allocation3 [shape = 'u8[131072]{0}', space=vmem, size = 0x20000, scoped, tag = 'input window, operand 0, single buffered']
    #allocation4 [shape = 's32[1]{0}', space=sflag, size = 0x4, scoped, tag = 'scoped memory for tpu_custom_call.1']
    #allocation5 [shape = 's32[1]{0}', space=sflag, size = 0x4, scoped, tag = 'scoped memory for tpu_custom_call.1']
    #allocation6 [shape = 'u8[16384]{0}', space=vmem, size = 0x4000, scoped, tag = 'input window, operand 1, single buffered']
    #allocation7 [shape = 's32[1]{0}', space=sflag, size = 0x4, scoped, tag = 'scoped memory for tpu_custom_call.1']
    #allocation8 [shape = 'u8[4096]{0}', space=vmem, size = 0x1000, scoped, tag = 'output window, operand 0, single buffered']
    %8 = vsyncpa [#allocation4], 0
    %9 = vsyncpa [#allocation7], 0
    %10 = vsyncpa [#allocation5], 0
    // Predicated region
    $region2: #{tpu_custom_call.1} parent=1 // pred_check
      _
    $region3: #{tpu_custom_call.1} parent=1 // pred_check_branch
      %12 = sbr.rel (0) target = $region5
    $region4: #{tpu_custom_call.1} parent=1 // pred_region
      %s14 = ssub.s32 4096, 4096
      %15 = vsyncadd [#allocation4], %s14
      %s16 = sshll.u32 [#allocation3], 4
      %s17 = int_to_ptr.vmem [resolvable:$true] %s16
      %22 = dma.hbm_to_vmem [thread:$0]  %s0, 4096, %s17, [#allocation4], 128, 128, 8
    $region5: #{tpu_custom_call.1} parent=1 // pred_fallthru
      _
    // Predicated region
    $region6: #{tpu_custom_call.1} parent=1 // pred_check
      _
    $region7: #{tpu_custom_call.1} parent=1 // pred_check_branch
      %24 = sbr.rel (0) target = $region9
    $region8: #{tpu_custom_call.1} parent=1 // pred_region
      %s26 = ssub.s32 512, 512
      %27 = vsyncadd [#allocation7], %s26
      %s28 = sshll.u32 [#allocation6], 4
      %s29 = int_to_ptr.vmem [resolvable:$true] %s28
      %34 = dma.hbm_to_vmem [thread:$0]  %s1, 512, %s29, [#allocation7], 128, 128, 8
    $region9: #{tpu_custom_call.1} parent=1 // pred_fallthru
      _
    // Predicated region
    $region10: #{tpu_custom_call.1} parent=1 // pred_check
      _
    $region11: #{tpu_custom_call.1} parent=1 // pred_check_branch
      %36 = sbr.rel (0) target = $region13
    $region12: #{tpu_custom_call.1} parent=1 // pred_region
      _
    $region13: #{tpu_custom_call.1} parent=1 // pred_fallthru
      _
    // Predicated region
    $region14: #{tpu_custom_call.1} parent=1 // pred_check
      _
    $region15: #{tpu_custom_call.1} parent=1 // pred_check_branch
      %38 = sbr.rel (0) target = $region17
    $region16: #{tpu_custom_call.1} parent=1 // pred_region
      %39 = dma.done [#allocation4], 4096
    $region17: #{tpu_custom_call.1} parent=1 // pred_fallthru
      _
    // Predicated region
    $region18: #{tpu_custom_call.1} parent=1 // pred_check
      _
    $region19: #{tpu_custom_call.1} parent=1 // pred_check_branch
      %41 = sbr.rel (0) target = $region21
    $region20: #{tpu_custom_call.1} parent=1 // pred_region
      %42 = dma.done [#allocation7], 512
    $region21: #{tpu_custom_call.1} parent=1 // pred_fallthru
      _
    %p43 = scmp.eq.s32.totalorder 0, 0
    // Predicated region
    $region22: #{tpu_custom_call.1} parent=1 // pred_check
      %p44 = pneg %p43
    $region23: #{tpu_custom_call.1} parent=1 // pred_check_branch
      %46 = sbr.rel (%p44) target = $region25
    $region24: #{tpu_custom_call.1} parent=1 // pred_region
      %vm47 = vcmask 261120
      %48 = vst.msk [vmem:[#allocation2] sm:$0xff] %vm47, 0.0
    $region25: #{tpu_custom_call.1} parent=1 // pred_fallthru
      _
    %v49 = vld [vmem:[#allocation2] sm:$0xff]
    %v50 = vld [vmem:[#allocation3] sm:$0xff]
    %v51 = vld [vmem:[#allocation3 + $0x8] sm:$0xff]
    %v52 = vld [vmem:[#allocation3 + $0x10] sm:$0xff]
    %v53 = vld [vmem:[#allocation3 + $0x18] sm:$0xff]
    %v54 = vld [vmem:[#allocation3 + $0x20] sm:$0xff]
    %v55 = vld [vmem:[#allocation3 + $0x28] sm:$0xff]
    %v56 = vld [vmem:[#allocation3 + $0x30] sm:$0xff]
    %v57 = vld [vmem:[#allocation3 + $0x38] sm:$0xff]
    %v58 = vld [vmem:[#allocation3 + $0x40] sm:$0xff]
    %v59 = vld [vmem:[#allocation3 + $0x48] sm:$0xff]
    %v60 = vld [vmem:[#allocation3 + $0x50] sm:$0xff]
    %v61 = vld [vmem:[#allocation3 + $0x58] sm:$0xff]
    %v62 = vld [vmem:[#allocation3 + $0x60] sm:$0xff]
    %v63 = vld [vmem:[#allocation3 + $0x68] sm:$0xff]
    %v64 = vld [vmem:[#allocation3 + $0x70] sm:$0xff]
    %v65 = vld [vmem:[#allocation3 + $0x78] sm:$0xff]
    %v66 = vld [vmem:[#allocation3 + $0x80] sm:$0xff]
    %v67 = vld [vmem:[#allocation3 + $0x88] sm:$0xff]
    %v68 = vld [vmem:[#allocation3 + $0x90] sm:$0xff]
    %v69 = vld [vmem:[#allocation3 + $0x98] sm:$0xff]
    %v70 = vld [vmem:[#allocation3 + $0xa0] sm:$0xff]
    %v71 = vld [vmem:[#allocation3 + $0xa8] sm:$0xff]
    %v72 = vld [vmem:[#allocation3 + $0xb0] sm:$0xff]
    %v73 = vld [vmem:[#allocation3 + $0xb8] sm:$0xff]
    %v74 = vld [vmem:[#allocation3 + $0xc0] sm:$0xff]
    %v75 = vld [vmem:[#allocation3 + $0xc8] sm:$0xff]
    %v76 = vld [vmem:[#allocation3 + $0xd0] sm:$0xff]
    %v77 = vld [vmem:[#allocation3 + $0xd8] sm:$0xff]
    %v78 = vld [vmem:[#allocation3 + $0xe0] sm:$0xff]
    %v79 = vld [vmem:[#allocation3 + $0xe8] sm:$0xff]
    %v80 = vld [vmem:[#allocation3 + $0xf0] sm:$0xff]
    %v81 = vld [vmem:[#allocation3 + $0xf8] sm:$0xff]
    %vm82 = vcmask 261120
    %v83 = vsel %vm82, %v50, 0.0
    %v84 = vsel %vm82, %v51, 0.0
    %v85 = vadd.f32 %v83, %v84
    %v86 = vsel %vm82, %v52, 0.0
    %v87 = vadd.f32 %v85, %v86
    %v88 = vsel %vm82, %v53, 0.0
    %v89 = vadd.f32 %v87, %v88
    %v90 = vrot.slane %v89, 4
    %v91 = vadd.f32 %v89, %v90
    %v92 = vrot.slane %v91, 2
    %v93 = vadd.f32 %v91, %v92
    %v94 = vrot.slane %v93, 1
    %v95 = vadd.f32 %v93, %v94
    %v96 = vsel %vm82, %v54, 0.0
    %v97 = vsel %vm82, %v55, 0.0
    %v98 = vadd.f32 %v96, %v97
    %v99 = vsel %vm82, %v56, 0.0
    %v100 = vadd.f32 %v98, %v99
    %v101 = vsel %vm82, %v57, 0.0
    %v102 = vadd.f32 %v100, %v101
    %v103 = vrot.slane %v102, 4
    %v104 = vadd.f32 %v102, %v103
    %v105 = vrot.slane %v104, 2
    %v106 = vadd.f32 %v104, %v105
    %v107 = vrot.slane %v106, 1
    %v108 = vadd.f32 %v106, %v107
    %v109 = vsel %vm82, %v58, 0.0
    %v110 = vsel %vm82, %v59, 0.0
    %v111 = vadd.f32 %v109, %v110
    %v112 = vsel %vm82, %v60, 0.0
    %v113 = vadd.f32 %v111, %v112
    %v114 = vsel %vm82, %v61, 0.0
    %v115 = vadd.f32 %v113, %v114
    %v116 = vrot.slane %v115, 4
    %v117 = vadd.f32 %v115, %v116
    %v118 = vrot.slane %v117, 2
    %v119 = vadd.f32 %v117, %v118
    %v120 = vrot.slane %v119, 1
    %v121 = vadd.f32 %v119, %v120
    %v122 = vsel %vm82, %v62, 0.0
    %v123 = vsel %vm82, %v63, 0.0
    %v124 = vadd.f32 %v122, %v123
    %v125 = vsel %vm82, %v64, 0.0
    %v126 = vadd.f32 %v124, %v125
    %v127 = vsel %vm82, %v65, 0.0
    %v128 = vadd.f32 %v126, %v127
    %v129 = vrot.slane %v128, 4
    %v130 = vadd.f32 %v128, %v129
    %v131 = vrot.slane %v130, 2
    %v132 = vadd.f32 %v130, %v131
    %v133 = vrot.slane %v132, 1
    %v134 = vadd.f32 %v132, %v133
    %v135 = vsel %vm82, %v66, 0.0
    %v136 = vsel %vm82, %v67, 0.0
    %v137 = vadd.f32 %v135, %v136
    %v138 = vsel %vm82, %v68, 0.0
    %v139 = vadd.f32 %v137, %v138
    %v140 = vsel %vm82, %v69, 0.0
    %v141 = vadd.f32 %v139, %v140
    %v142 = vrot.slane %v141, 4
    %v143 = vadd.f32 %v141, %v142
    %v144 = vrot.slane %v143, 2
    %v145 = vadd.f32 %v143, %v144
    %v146 = vrot.slane %v145, 1
    %v147 = vadd.f32 %v145, %v146
    %v148 = vsel %vm82, %v70, 0.0
    %v149 = vsel %vm82, %v71, 0.0
    %v150 = vadd.f32 %v148, %v149
    %v151 = vsel %vm82, %v72, 0.0
    %v152 = vadd.f32 %v150, %v151
    %v153 = vsel %vm82, %v73, 0.0
    %v154 = vadd.f32 %v152, %v153
    %v155 = vrot.slane %v154, 4
    %v156 = vadd.f32 %v154, %v155
    %v157 = vrot.slane %v156, 2
    %v158 = vadd.f32 %v156, %v157
    %v159 = vrot.slane %v158, 1
    %v160 = vadd.f32 %v158, %v159
    %v161 = vsel %vm82, %v74, 0.0
    %v162 = vsel %vm82, %v75, 0.0
    %v163 = vadd.f32 %v161, %v162
    %v164 = vsel %vm82, %v76, 0.0
    %v165 = vadd.f32 %v163, %v164
    %v166 = vsel %vm82, %v77, 0.0
    %v167 = vadd.f32 %v165, %v166
    %v168 = vrot.slane %v167, 4
    %v169 = vadd.f32 %v167, %v168
    %v170 = vrot.slane %v169, 2
    %v171 = vadd.f32 %v169, %v170
    %v172 = vrot.slane %v171, 1
    %v173 = vadd.f32 %v171, %v172
    %v174 = vsel %vm82, %v78, 0.0
    %v175 = vsel %vm82, %v79, 0.0
    %v176 = vadd.f32 %v174, %v175
    %v177 = vsel %vm82, %v80, 0.0
    %v178 = vadd.f32 %v176, %v177
    %v179 = vsel %vm82, %v81, 0.0
    %v180 = vadd.f32 %v178, %v179
    %v181 = vrot.slane %v180, 4
    %v182 = vadd.f32 %v180, %v181
    %v183 = vrot.slane %v182, 2
    %v184 = vadd.f32 %v182, %v183
    %v185 = vrot.slane %v184, 1
    %v186 = vadd.f32 %v184, %v185
    %vm195 = vcmask 1041409
    %v196 = vsel %vm195, %v108, %v95
    %vm197 = vcmask 1042434
    %v198 = vsel %vm197, %v121, %v196
    %vm199 = vcmask 1043459
    %v200 = vsel %vm199, %v134, %v198
    %vm201 = vcmask 1044484
    %v202 = vsel %vm201, %v147, %v200
    %vm203 = vcmask 1045509
    %v204 = vsel %vm203, %v160, %v202
    %vm205 = vcmask 1046534
    %v206 = vsel %vm205, %v173, %v204
    %vm207 = vcmask 1047559
    %v208 = vsel %vm207, %v186, %v206
    %v210 = vadd.f32 %v49, %v208
    %211 = vst.msk [vmem:[#allocation2] sm:$0xff] %vm82, %v210
    // Predicated region
    $region26: #{tpu_custom_call.1} parent=1 // pred_check
      %p212 = pneg %p43
    $region27: #{tpu_custom_call.1} parent=1 // pred_check_branch
      %214 = sbr.rel (%p212) target = $region29
    $region28: #{tpu_custom_call.1} parent=1 // pred_region
      %v215 = vld [vmem:[#allocation2] sm:$0xff]
      %v216 = vmul.f32 %v215, 0.03125
      %v217 = vsel %vm82, %v216, 0.0
      %v218 = vrot.slane %v217, 4
      %v219 = vadd.f32 %v217, %v218
      %v220 = vrot.slane %v219, 2
      %v221 = vadd.f32 %v219, %v220
      %v222 = vrot.slane %v221, 1
      %v223 = vadd.f32 %v221, %v222
      %v224 = vrcp.pop 8.0
      %v225 = vmul.f32 %v223, %v224
      %v226 = vsub.f32 %v216, %v225
      %v227 = vmul.f32 %v226, %v226
      %v228 = vsel %vm82, %v227, 0.0
      %v229 = vrot.slane %v228, 4
      %v230 = vadd.f32 %v228, %v229
      %v231 = vrot.slane %v230, 2
      %v232 = vadd.f32 %v230, %v231
      %v233 = vrot.slane %v232, 1
      %v234 = vadd.f32 %v232, %v233
      %v235 = vmul.f32 %v234, %v224
      %v236 = vadd.f32 %v235, 1e-06
      %v237 = vrsqrt.pop %v236
      %v238 = vmul.f32 %v226, %v237
      %v239 = vld [vmem:[#allocation6] sm:$0xff]
      %v240 = vld [vmem:[#allocation6 + $0x8] sm:$0xff]
      %v241 = vld [vmem:[#allocation6 + $0x10] sm:$0xff]
      %v242 = vld [vmem:[#allocation6 + $0x18] sm:$0xff]
      %v243 = vld [vmem:[%s2] sm:$0x1]
      %v245 = vlaneseq
      %v246 = vshrl.u32 %v245, 7
      %v247 = vsub.s32 0, %v246
      %v248 = vrot.slane %v243, %v247
      %v251 = vsel %vm82, %v238, 0
      %253 = vmatprep.subr.mxu0 0.0
      %254 = vmatpush1.msra.mxu0 %v239
      %255 = vmatprep.subr.mxu0 0.0
      %256 = vmatpush1.msra.mxu0 %v240
      %257 = vmatprep.subr.mxu0 0.0
      %258 = vmatpush1.msra.mxu0 %v241
      %259 = vmatprep.subr.mxu0 0.0
      %260 = vmatpush1.msra.mxu0 %v242
      %261 = vmatprep.subr.mxu0 0.0
      %262 = vmatpush1.msra.mxu0 0.0
      %263 = vmatprep.subr.mxu0 0.0
      %264 = vmatpush1.msra.mxu0 0.0
      %265 = vmatprep.subr.mxu0 0.0
      %266 = vmatpush1.msra.mxu0 0.0
      %267 = vmatprep.subr.mxu0 0.0
      %268 = vmatpush1.msra.mxu0 0.0
      %269 = vmatprep.subr.mxu0 0.0
      %270 = vmatpush1.msra.mxu0 0.0
      %271 = vmatprep.subr.mxu0 0.0
      %272 = vmatpush1.msra.mxu0 0.0
      %273 = vmatprep.subr.mxu0 0.0
      %274 = vmatpush1.msra.mxu0 0.0
      %275 = vmatprep.subr.mxu0 0.0
      %276 = vmatpush1.msra.mxu0 0.0
      %277 = vmatprep.subr.mxu0 0.0
      %278 = vmatpush1.msra.mxu0 0.0
      %279 = vmatprep.subr.mxu0 0.0
      %280 = vmatpush1.msra.mxu0 0.0
      %281 = vmatprep.subr.mxu0 0.0
      %282 = vmatpush1.msra.mxu0 0.0
      %283 = vmatprep.subr.mxu0 0.0
      %284 = vmatpush1.msra.mxu0 0.0
      %285 = vmatprep.subr.mxu0 0.0
      %286 = vmatpush1.msra.mxu0 0.0
      %287 = vmatprep.subr.mxu0 0.0
      %288 = vmatpush1.msra.mxu0 0.0
      %289 = vmatprep.subr.mxu0 0.0
      %290 = vmatpush1.msra.mxu0 0.0
      %291 = vmatprep.subr.mxu0 0.0
      %292 = vmatpush1.msra.mxu0 0.0
      %293 = vmatprep.subr.mxu0 0.0
      %294 = vmatpush1.msra.mxu0 0.0
      %295 = vmatprep.subr.mxu0 0.0
      %296 = vmatpush1.msra.mxu0 0.0
      %297 = vmatprep.subr.mxu0 0.0
      %298 = vmatpush1.msra.mxu0 0.0
      %299 = vmatprep.subr.mxu0 0.0
      %300 = vmatpush1.msra.mxu0 0.0
      %301 = vmatprep.subr.mxu0 0.0
      %302 = vmatpush1.msra.mxu0 0.0
      %303 = vmatprep.subr.mxu0 0.0
      %304 = vmatpush1.msra.mxu0 0.0
      %305 = vmatprep.subr.mxu0 0.0
      %306 = vmatpush1.msra.mxu0 0.0
      %307 = vmatprep.subr.mxu0 0.0
      %308 = vmatpush1.msra.mxu0 0.0
      %309 = vmatprep.subr.mxu0 0.0
      %310 = vmatpush1.msra.mxu0 0.0
      %311 = vmatprep.subr.mxu0 0.0
      %312 = vmatpush1.msra.mxu0 0.0
      %313 = vmatprep.subr.mxu0 0.0
      %314 = vmatpush1.msra.mxu0 0.0
      %315 = vmatprep.subr.mxu0 0.0
      %316 = vmatpush1.msra.mxu0 0.0
      %317 = vmatprep.mubr.f32.mxu0 0.0
      %318 = vmatmul.mubr.f32.gmra.mrb[0].mxu0 %v251
      %v319 = vpop.f32.mrb[0].mxu0
      %v320 = vadd.f32 %v248, %v319
      %v321 = vpop.f32.mrb[0].mxu0
      %322 = vdwg.mxu0
      %323 = vst [vmem:[#allocation8] sm:$0xff] %v320
    $region29: #{tpu_custom_call.1} parent=1 // pred_fallthru
      _
    // Predicated region
    $region30: #{tpu_custom_call.1} parent=1 // pred_check
      _
    $region31: #{tpu_custom_call.1} parent=1 // pred_check_branch
      %325 = sbr.rel (0) target = $region33
    $region32: #{tpu_custom_call.1} parent=1 // pred_region
      %s327 = ssub.s32 128, 128
      %328 = vsyncadd [#allocation5], %s327
      %s330 = sshll.u32 [#allocation8], 4
      %s331 = int_to_ptr.vmem [resolvable:$true] %s330
      %333 = dma.vmem_to_hbm [thread:$0]  %s331, 128, %s3, [#allocation5]
    $region33: #{tpu_custom_call.1} parent=1 // pred_fallthru
      _
    // Predicated region
    $region34: #{tpu_custom_call.1} parent=1 // pred_check
      _
    $region35: #{tpu_custom_call.1} parent=1 // pred_check_branch
      %335 = sbr.rel (0) target = $region37
    $region36: #{tpu_custom_call.1} parent=1 // pred_region
      %336 = dma.done [#allocation5], 128
    $region37: #{tpu_custom_call.1} parent=1 // pred_fallthru
      _
    %337 = vsyncpa [#allocation4], 1
    %338 = vsyncpa [#allocation7], 1
    %339 = vsyncpa [#allocation5], 1

</llo_original>
